<compile_context>
chip_gen: v5e
topology: v5e:2x2
jax: 0.10.0
libtpu: 0.0.40
codegen_flags: <defaults>
</compile_context>

<pallas_src>
import jax
import jax.numpy as jnp
from jax import lax
from jax.experimental import pallas as pl
from jax.experimental.pallas import tpu as pltpu


def textual_attention_kernel(qlen_ref, hs_ref, sv_ref, w3_ref, b3_ref,
                             w2_ref, b2_ref, w1_ref, b1_ref, out_ref):
    # qlen_ref: [B]        int32, SMEM (scalar prefetch)
    # hs_ref  : [Bt, T, H] hidden_sequence tile
    # sv_ref  : [Bt, 2H]   summary_vector tile
    # w3_ref  : [2H, 2H], b3_ref: [1, 2H]
    # w2_ref  : [2H, H],  b2_ref: [1, H]
    # w1_ref  : [1, H],   b1_ref: [1, 1]
    # out_ref : [Bt, H]
    b = pl.program_id(0)
    hs = hs_ref[...].astype(jnp.float32)                           # [Bt, T, H]
    sv = sv_ref[...].astype(jnp.float32)                           # [Bt, 2H]
    Bt, T, H = hs.shape

    # summary path: s = W2(relu(W3(sv)))  (MXU, f32 accumulation)
    h3 = jnp.dot(sv, w3_ref[...].astype(jnp.float32),
                 preferred_element_type=jnp.float32) + b3_ref[...]
    h3 = jnp.maximum(h3, 0.0)                                      # [Bt, 2H]
    s = jnp.dot(h3, w2_ref[...].astype(jnp.float32),
                preferred_element_type=jnp.float32) + b2_ref[...]  # [Bt, H]

    # Fold W1 (H -> 1) into the gate before touching [Bt, T, H]:
    #   att[b,t] = sum_h hs[b,t,h] * (s[b,h] * w1[h]) + b1
    s_w1 = s * w1_ref[...].astype(jnp.float32)                     # [Bt, H]
    att = jnp.sum(hs * s_w1[:, None, :], axis=-1) + b1_ref[...]    # [Bt, T]

    # Length mask from SMEM-prefetched query_length.
    ids = lax.broadcasted_iota(jnp.int32, (Bt, T), 1)
    len_rows = [jnp.full((1, T), qlen_ref[b * Bt + r], dtype=jnp.int32)
                for r in range(Bt)]
    len_mat = len_rows[0] if Bt == 1 else jnp.concatenate(len_rows, axis=0)
    att = jnp.where(ids >= len_mat, -jnp.inf, att)                 # [Bt, T]

    # Softmax over T, then PyTorch's masked_fill_(x != x, 0) NaN scrub
    # (fully-masked rows produce all-zero weights, matching the module).
    m = jnp.max(att, axis=-1, keepdims=True)
    e = jnp.exp(att - m)
    denom = jnp.sum(e, axis=-1, keepdims=True)
    p = e * pl.reciprocal(denom, approx=True)
    p = jnp.where(jnp.isnan(p), 0.0, p)                            # [Bt, T]

    # Weighted sum over T: VPU broadcast-multiply + sublane reduce (MXU stays free).
    out = jnp.sum(p[:, :, None] * hs, axis=1)                      # [Bt, H]
    out_ref[...] = out.astype(out_ref.dtype)


def _pick_batch_tile(batch):
    # Largest divisor of B that is <= 8 keeps block shapes layout-friendly
    # (Bt == B for small batches, Bt == 8 for batches divisible by 8).
    for cand in (8, 4, 2, 1):
        if batch % cand == 0:
            return cand
    return 1


def textual_attention(hidden_sequence, summary_vector, query_length, params):
    """params = (w3, b3, w2, b2, w1, b1); weights stored as [in_features, out_features]."""
    B, T, H = hidden_sequence.shape
    w3, b3, w2, b2, w1, b1 = params
    qlen = query_length.astype(jnp.int32).reshape(B)

    Bt = _pick_batch_tile(B)
    grid = (B // Bt,)

    grid_spec = pltpu.PrefetchScalarGridSpec(
        num_scalar_prefetch=1,
        grid=grid,
        in_specs=[
            pl.BlockSpec((Bt, T, H), lambda b, ql: (b, 0, 0)),      # hidden_sequence
            pl.BlockSpec((Bt, 2 * H), lambda b, ql: (b, 0)),        # summary_vector
            pl.BlockSpec((2 * H, 2 * H), lambda b, ql: (0, 0)),     # W3 (resident)
            pl.BlockSpec((1, 2 * H), lambda b, ql: (0, 0)),         # b3
            pl.BlockSpec((2 * H, H), lambda b, ql: (0, 0)),         # W2 (resident)
            pl.BlockSpec((1, H), lambda b, ql: (0, 0)),             # b2
            pl.BlockSpec((1, H), lambda b, ql: (0, 0)),             # W1
            pl.BlockSpec((1, 1), lambda b, ql: (0, 0)),             # b1
        ],
        out_specs=pl.BlockSpec((Bt, H), lambda b, ql: (b, 0)),
    )

    return pl.pallas_call(
        textual_attention_kernel,
        out_shape=jax.ShapeDtypeStruct((B, H), jnp.float32),
        grid_spec=grid_spec,
        compiler_params=pltpu.CompilerParams(
            dimension_semantics=("parallel",),   # batch tiles are independent (v7x 2 TCs)
        ),
    )(qlen, hidden_sequence, summary_vector, w3, b3, w2, b2, w1, b1)


def init_params(key, hidden_dim):
    """Deterministic synthetic parameters matching nn.Linear shapes (pre-transposed)."""
    q_dim = 2 * hidden_dim
    k3, k3b, k2, k2b, k1, k1b = jax.random.split(key, 6)
    scale = 0.05
    w3 = scale * jax.random.normal(k3, (q_dim, q_dim), jnp.float32)       # W3: 2H -> 2H
    b3 = scale * jax.random.normal(k3b, (1, q_dim), jnp.float32)
    w2 = scale * jax.random.normal(k2, (q_dim, hidden_dim), jnp.float32)  # W2: 2H -> H
    b2 = scale * jax.random.normal(k2b, (1, hidden_dim), jnp.float32)
    w1 = scale * jax.random.normal(k1, (1, hidden_dim), jnp.float32)      # W1: H -> 1
    b1 = scale * jax.random.normal(k1b, (1, 1), jnp.float32)
    return (w3, b3, w2, b2, w1, b1)


def reference_jax(hidden_sequence, summary_vector, query_length, params):
    """Plain-JAX reference mirroring the PyTorch forward."""
    w3, b3, w2, b2, w1, b1 = params
    B, T, H = hidden_sequence.shape
    h3 = jnp.maximum(summary_vector @ w3 + b3, 0.0)
    s = h3 @ w2 + b2
    gated = hidden_sequence * s[:, None, :]
    att = jnp.sum(gated * w1[None, :, :], axis=-1) + b1
    ids = jnp.arange(T, dtype=jnp.int32)[None, :]
    mask = ids >= query_length.astype(jnp.int32)[:, None]
    att = jnp.where(mask, -jnp.inf, att)
    p = jax.nn.softmax(att, axis=-1)
    p = jnp.where(jnp.isnan(p), 0.0, p)
    return jnp.einsum('bt,bth->bh', p, hidden_sequence)


if __name__ == "__main__":
    B, T, H = 2, 8, 32          # batch, seq len, hidden_dim (q_dim = 64)
    key = jax.random.PRNGKey(0)
    kp, kh, ks = jax.random.split(key, 3)

    params = init_params(kp, H)
    hidden_sequence = jax.random.normal(kh, (B, T, H), jnp.float32)
    summary_vector = jax.random.normal(ks, (B, 2 * H), jnp.float32)
    query_length = jnp.array([8, 5], dtype=jnp.int32)   # second row partially masked

    out = textual_attention(hidden_sequence, summary_vector, query_length, params)
    out = jax.block_until_ready(out)

    ref = reference_jax(hidden_sequence, summary_vector, query_length, params)
    assert out.shape == (B, H)
    # Slightly relaxed tolerance: softmax denominator uses the EUP approx reciprocal.
    assert jnp.allclose(out, ref, atol=2e-3, rtol=2e-3), "mismatch vs JAX reference"

    print("KERNEL_OK")
</pallas_src>

<mosaic_0001>
module attributes {stable_mosaic.version = 11 : i64} {
  func.func @textual_attention_kernel(%arg0: i32, %arg1: memref<2xi32, #tpu.memory_space<smem>>, %arg2: memref<2x8x32xf32, #tpu.memory_space<vmem>>, %arg3: memref<2x64xf32, #tpu.memory_space<vmem>>, %arg4: memref<64x64xf32, #tpu.memory_space<vmem>>, %arg5: memref<1x64xf32, #tpu.memory_space<vmem>>, %arg6: memref<64x32xf32, #tpu.memory_space<vmem>>, %arg7: memref<1x32xf32, #tpu.memory_space<vmem>>, %arg8: memref<1x32xf32, #tpu.memory_space<vmem>>, %arg9: memref<1x1xf32, #tpu.memory_space<vmem>>, %arg10: memref<2x32xf32, #tpu.memory_space<vmem>>) attributes {dimension_semantics = [#tpu.dimension_semantics<parallel>], iteration_bounds = array<i64: 1>, scalar_prefetch = 1 : i64, scratch_operands = 0 : i64, tpu.core_type = #tpu.core_type<tc>, window_params = [{transform_indices = @transform_0, window_bounds = array<i64: 2, 8, 32>}, {transform_indices = @transform_1, window_bounds = array<i64: 2, 64>}, {pipeline_mode = #tpu.pipeline_mode<synchronous>, transform_indices = @transform_2, window_bounds = array<i64: 64, 64>}, {pipeline_mode = #tpu.pipeline_mode<synchronous>, transform_indices = @transform_3, window_bounds = array<i64: 1, 64>}, {pipeline_mode = #tpu.pipeline_mode<synchronous>, transform_indices = @transform_4, window_bounds = array<i64: 64, 32>}, {pipeline_mode = #tpu.pipeline_mode<synchronous>, transform_indices = @transform_5, window_bounds = array<i64: 1, 32>}, {pipeline_mode = #tpu.pipeline_mode<synchronous>, transform_indices = @transform_6, window_bounds = array<i64: 1, 32>}, {pipeline_mode = #tpu.pipeline_mode<synchronous>, transform_indices = @transform_7, window_bounds = array<i64: 1, 1>}, {transform_indices = @transform_8, window_bounds = array<i64: 2, 32>}]} {
    %c0 = arith.constant 0 : index
    %c0_0 = arith.constant 0 : index
    %c0_1 = arith.constant 0 : index
    %0 = vector.load %arg2[%c0, %c0_0, %c0_1] : memref<2x8x32xf32, #tpu.memory_space<vmem>>, vector<2x8x32xf32>
    %c0_2 = arith.constant 0 : index
    %c0_3 = arith.constant 0 : index
    %1 = vector.load %arg3[%c0_2, %c0_3] : memref<2x64xf32, #tpu.memory_space<vmem>>, vector<2x64xf32>
    %c0_4 = arith.constant 0 : index
    %c0_5 = arith.constant 0 : index
    %2 = vector.load %arg4[%c0_4, %c0_5] : memref<64x64xf32, #tpu.memory_space<vmem>>, vector<64x64xf32>
    %cst = arith.constant dense<0.000000e+00> : vector<2x64xf32>
    %3 = tpu.matmul %1, %2, %cst {dimension_numbers = #tpu.dot_dimension_numbers<[1], [0], [0], [1], [0, 0, 1, 1], [], []>} : vector<2x64xf32>, vector<64x64xf32>, vector<2x64xf32> -> vector<2x64xf32>
    %c0_6 = arith.constant 0 : index
    %c0_7 = arith.constant 0 : index
    %4 = vector.load %arg5[%c0_6, %c0_7] : memref<1x64xf32, #tpu.memory_space<vmem>>, vector<1x64xf32>
    %5 = vector.broadcast %4 : vector<1x64xf32> to vector<2x64xf32>
    %6 = arith.addf %3, %5 : vector<2x64xf32>
    %cst_8 = arith.constant 0.000000e+00 : f32
    %7 = vector.broadcast %cst_8 : f32 to vector<2x64xf32>
    %8 = arith.maximumf %6, %7 : vector<2x64xf32>
    %c0_9 = arith.constant 0 : index
    %c0_10 = arith.constant 0 : index
    %9 = vector.load %arg6[%c0_9, %c0_10] : memref<64x32xf32, #tpu.memory_space<vmem>>, vector<64x32xf32>
    %cst_11 = arith.constant dense<0.000000e+00> : vector<2x32xf32>
    %10 = tpu.matmul %8, %9, %cst_11 {dimension_numbers = #tpu.dot_dimension_numbers<[1], [0], [0], [1], [0, 0, 1, 1], [], []>} : vector<2x64xf32>, vector<64x32xf32>, vector<2x32xf32> -> vector<2x32xf32>
    %c0_12 = arith.constant 0 : index
    %c0_13 = arith.constant 0 : index
    %11 = vector.load %arg7[%c0_12, %c0_13] : memref<1x32xf32, #tpu.memory_space<vmem>>, vector<1x32xf32>
    %12 = vector.broadcast %11 : vector<1x32xf32> to vector<2x32xf32>
    %13 = arith.addf %10, %12 : vector<2x32xf32>
    %c0_14 = arith.constant 0 : index
    %c0_15 = arith.constant 0 : index
    %14 = vector.load %arg8[%c0_14, %c0_15] : memref<1x32xf32, #tpu.memory_space<vmem>>, vector<1x32xf32>
    %15 = vector.broadcast %14 : vector<1x32xf32> to vector<2x32xf32>
    %16 = arith.mulf %13, %15 : vector<2x32xf32>
    %17 = vector.shape_cast %16 : vector<2x32xf32> to vector<2x1x32xf32>
    %18 = vector.broadcast %17 : vector<2x1x32xf32> to vector<2x8x32xf32>
    %19 = arith.mulf %0, %18 : vector<2x8x32xf32>
    %cst_16 = arith.constant dense<0.000000e+00> : vector<2x8xf32>
    %20 = vector.multi_reduction <add>, %19, %cst_16 [2] : vector<2x8x32xf32> to vector<2x8xf32>
    %c0_17 = arith.constant 0 : index
    %c0_18 = arith.constant 0 : index
    %21 = vector.load %arg9[%c0_17, %c0_18] : memref<1x1xf32, #tpu.memory_space<vmem>>, vector<1x1xf32>
    %22 = vector.broadcast %21 : vector<1x1xf32> to vector<2x8xf32>
    %23 = arith.addf %20, %22 : vector<2x8xf32>
    %24 = tpu.iota {dimensions = array<i32: 1>} : vector<2x8xi32>
    %c2_i32 = arith.constant 2 : i32
    %25 = arith.muli %arg0, %c2_i32 : i32
    %c0_i32 = arith.constant 0 : i32
    %26 = arith.addi %25, %c0_i32 : i32
    %27 = arith.index_cast %26 : i32 to index
    %28 = memref.load %arg1[%27] : memref<2xi32, #tpu.memory_space<smem>>
    %29 = vector.broadcast %28 : i32 to vector<1x8xi32>
    %c2_i32_19 = arith.constant 2 : i32
    %30 = arith.muli %arg0, %c2_i32_19 : i32
    %c1_i32 = arith.constant 1 : i32
    %31 = arith.addi %30, %c1_i32 : i32
    %32 = arith.index_cast %31 : i32 to index
    %33 = memref.load %arg1[%32] : memref<2xi32, #tpu.memory_space<smem>>
    %34 = vector.broadcast %33 : i32 to vector<1x8xi32>
    %35 = tpu.concatenate %29, %34 in 0 : vector<1x8xi32>, vector<1x8xi32> -> vector<2x8xi32>
    %36 = arith.cmpi sge, %24, %35 : vector<2x8xi32>
    %cst_20 = arith.constant 0xFF800000 : f32
    %37 = vector.broadcast %cst_20 : f32 to vector<2x8xf32>
    %38 = arith.select %36, %37, %23 : vector<2x8xi1>, vector<2x8xf32>
    %cst_21 = arith.constant dense<0xFF800000> : vector<2xf32>
    %39 = vector.multi_reduction <maximumf>, %38, %cst_21 [1] : vector<2x8xf32> to vector<2xf32>
    %40 = vector.shape_cast %39 : vector<2xf32> to vector<2x1xf32>
    %41 = vector.broadcast %40 : vector<2x1xf32> to vector<2x8xf32>
    %42 = arith.subf %38, %41 : vector<2x8xf32>
    %43 = math.exp %42 : vector<2x8xf32>
    %cst_22 = arith.constant dense<0.000000e+00> : vector<2xf32>
    %44 = vector.multi_reduction <add>, %43, %cst_22 [1] : vector<2x8xf32> to vector<2xf32>
    %45 = vector.shape_cast %44 : vector<2xf32> to vector<2x1xf32>
    %46 = tpu.reciprocal %45 {approx = true} : vector<2x1xf32> -> vector<2x1xf32>
    %47 = vector.broadcast %46 : vector<2x1xf32> to vector<2x8xf32>
    %48 = arith.mulf %43, %47 : vector<2x8xf32>
    %49 = arith.cmpf one, %48, %48 : vector<2x8xf32>
    %cst_23 = arith.constant 0.000000e+00 : f32
    %50 = vector.broadcast %cst_23 : f32 to vector<2x8xf32>
    %51 = arith.select %49, %50, %48 : vector<2x8xi1>, vector<2x8xf32>
    %52 = vector.shape_cast %51 : vector<2x8xf32> to vector<2x8x1xf32>
    %53 = vector.broadcast %52 : vector<2x8x1xf32> to vector<2x8x32xf32>
    %54 = arith.mulf %53, %0 : vector<2x8x32xf32>
    %cst_24 = arith.constant dense<0.000000e+00> : vector<2x32xf32>
    %55 = vector.multi_reduction <add>, %54, %cst_24 [1] : vector<2x8x32xf32> to vector<2x32xf32>
    %c0_25 = arith.constant 0 : index
    %c0_26 = arith.constant 0 : index
    %56 = vector.load %arg10[%c0_25, %c0_26] : memref<2x32xf32, #tpu.memory_space<vmem>>, vector<2x32xf32>
    tpu.vector_store %arg10[%c0_25, %c0_26], %55 {strides = array<i32>} : memref<2x32xf32, #tpu.memory_space<vmem>>, vector<2x32xf32>,
    return
  }
  func.func @transform_0(%arg0: i32, %arg1: memref<2xi32, #tpu.memory_space<smem>>) -> (i32, i32, i32) {
    %c0_i32 = arith.constant 0 : i32
    %c0_i32_0 = arith.constant 0 : i32
    %c0_i32_1 = arith.constant 0 : i32
    return %arg0, %c0_i32, %c0_i32_0 : i32, i32, i32
  }
  func.func @transform_1(%arg0: i32, %arg1: memref<2xi32, #tpu.memory_space<smem>>) -> (i32, i32) {
    %c0_i32 = arith.constant 0 : i32
    %c0_i32_0 = arith.constant 0 : i32
    return %arg0, %c0_i32 : i32, i32
  }
  func.func @transform_2(%arg0: i32, %arg1: memref<2xi32, #tpu.memory_space<smem>>) -> (i32, i32) {
    %c0_i32 = arith.constant 0 : i32
    %c0_i32_0 = arith.constant 0 : i32
    %c0_i32_1 = arith.constant 0 : i32
    return %c0_i32, %c0_i32_0 : i32, i32
  }
  func.func @transform_3(%arg0: i32, %arg1: memref<2xi32, #tpu.memory_space<smem>>) -> (i32, i32) {
    %c0_i32 = arith.constant 0 : i32
    %c0_i32_0 = arith.constant 0 : i32
    %c0_i32_1 = arith.constant 0 : i32
    return %c0_i32, %c0_i32_0 : i32, i32
  }
  func.func @transform_4(%arg0: i32, %arg1: memref<2xi32, #tpu.memory_space<smem>>) -> (i32, i32) {
    %c0_i32 = arith.constant 0 : i32
    %c0_i32_0 = arith.constant 0 : i32
    %c0_i32_1 = arith.constant 0 : i32
    return %c0_i32, %c0_i32_0 : i32, i32
  }
  func.func @transform_5(%arg0: i32, %arg1: memref<2xi32, #tpu.memory_space<smem>>) -> (i32, i32) {
    %c0_i32 = arith.constant 0 : i32
    %c0_i32_0 = arith.constant 0 : i32
    %c0_i32_1 = arith.constant 0 : i32
    return %c0_i32, %c0_i32_0 : i32, i32
  }
  func.func @transform_6(%arg0: i32, %arg1: memref<2xi32, #tpu.memory_space<smem>>) -> (i32, i32) {
    %c0_i32 = arith.constant 0 : i32
    %c0_i32_0 = arith.constant 0 : i32
    %c0_i32_1 = arith.constant 0 : i32
    return %c0_i32, %c0_i32_0 : i32, i32
  }
  func.func @transform_7(%arg0: i32, %arg1: memref<2xi32, #tpu.memory_space<smem>>) -> (i32, i32) {
    %c0_i32 = arith.constant 0 : i32
    %c0_i32_0 = arith.constant 0 : i32
    %c0_i32_1 = arith.constant 0 : i32
    return %c0_i32, %c0_i32_0 : i32, i32
  }
  func.func @transform_8(%arg0: i32, %arg1: memref<2xi32, #tpu.memory_space<smem>>) -> (i32, i32) {
    %c0_i32 = arith.constant 0 : i32
    %c0_i32_0 = arith.constant 0 : i32
    return %arg0, %c0_i32 : i32, i32
  }
}

</mosaic_0001>

<llo_original>
// kernel: tpu_custom_call.1
$region0: #{tpu_custom_call.1}
  #allocation0 [shape = 'u32[]', space=smem, size = 0x4, offset = 0x4, fixed_abs, tag = 'smem constant byte address 0x4 - core index']
  #allocation1 [shape = 'u32[72,128]{1,0:T(1,128)}', space=vmem, size = 0x9000, scoped, tag = 'internal scratch']
  #allocation2 [shape = 's32[1]{0}', space=sflag, size = 0x4, scoped, tag = 'scoped memory for tpu_custom_call.1']
  #allocation3 [shape = 'u8[512]{0}', space=smem, size = 0x200, scoped, tag = 'prefetched SMEM operand 0']
  #allocation4 [shape = 'f32[1,1]{1,0:T(1,128)S(1)}', space=vmem, size = 0x200, scoped, tag = 'scoped memory for tpu_custom_call.1']
  %s0 = inlined_call_operand.vmem [shape: s32[2], index: 0, kind: input, shape index: {}]
  %s1 = inlined_call_operand.vmem [shape: f32[2,8,32], index: 1, kind: input, shape index: {}]
  %s2 = inlined_call_operand.vmem [shape: f32[2,64], index: 2, kind: input, shape index: {}]
  %s3 = inlined_call_operand.vmem [shape: f32[64,64], index: 3, kind: input, shape index: {}]
  %s4 = inlined_call_operand.vmem [shape: f32[1,64], index: 4, kind: input, shape index: {}]
  %s5 = inlined_call_operand.vmem [shape: f32[64,32], index: 5, kind: input, shape index: {}]
  %s6 = inlined_call_operand.vmem [shape: f32[1,32], index: 6, kind: input, shape index: {}]
  %s7 = inlined_call_operand.vmem [shape: f32[1,32], index: 7, kind: input, shape index: {}]
  %s8 = inlined_call_operand.<no memory space> [shape: f32[1,1], index: 8, kind: input, shape index: {}]
  %s9 = inlined_call_operand.hbm [shape: f32[2,32], index: 9, kind: output, shape index: {}]
  %s10 = sld [smem:[#allocation0]]
  $region42: #{tpu_custom_call.1} parent=0
    _
  %s12 = ssub.s32 1, %s10
  %s13 = scalar_select 0, %s12, %s10
  %s15 = sshll.u32 %s0, 4
  %s16 = int_to_ptr.vmem [resolvable:$true] %s15
  %18 = dma.vmem_to_smem %s16, 16, [#allocation3], [#allocation2]
  %v19 = vstv %s8
  %20 = vst [vmem:[#allocation4] sm:$0x1] %v19
  %22 = dma.done [#allocation2], 16
  %23 = sfence
  $region1: #{tpu_custom_call.1} parent=0
    #allocation5 [shape = 'u8[1024]{0}', space=vmem, size = 0x400, scoped, tag = 'output window, operand 0, single buffered']
    #allocation6 [shape = 's32[1]{0}', space=sflag, size = 0x4, scoped, tag = 'scoped memory for tpu_custom_call.1']
    %24 = vsyncpa [#allocation6], 0
    // Predicated region
    $region2: #{tpu_custom_call.1} parent=1 // pred_check
      _
    $region3: #{tpu_custom_call.1} parent=1 // pred_check_branch
      %26 = sbr.rel (0) target = $region5
    $region4: #{tpu_custom_call.1} parent=1 // pred_region
      _
    $region5: #{tpu_custom_call.1} parent=1 // pred_fallthru
      _
    // Predicated region
    $region6: #{tpu_custom_call.1} parent=1 // pred_check
      _
    $region7: #{tpu_custom_call.1} parent=1 // pred_check_branch
      %28 = sbr.rel (0) target = $region9
    $region8: #{tpu_custom_call.1} parent=1 // pred_region
      _
    $region9: #{tpu_custom_call.1} parent=1 // pred_fallthru
      _
    // Predicated region
    $region10: #{tpu_custom_call.1} parent=1 // pred_check
      _
    $region11: #{tpu_custom_call.1} parent=1 // pred_check_branch
      %30 = sbr.rel (0) target = $region13
    $region12: #{tpu_custom_call.1} parent=1 // pred_region
      _
    $region13: #{tpu_custom_call.1} parent=1 // pred_fallthru
      _
    // Predicated region
    $region14: #{tpu_custom_call.1} parent=1 // pred_check
      _
    $region15: #{tpu_custom_call.1} parent=1 // pred_check_branch
      %32 = sbr.rel (0) target = $region17
    $region16: #{tpu_custom_call.1} parent=1 // pred_region
      _
    $region17: #{tpu_custom_call.1} parent=1 // pred_fallthru
      _
    // Predicated region
    $region18: #{tpu_custom_call.1} parent=1 // pred_check
      _
    $region19: #{tpu_custom_call.1} parent=1 // pred_check_branch
      %34 = sbr.rel (0) target = $region21
    $region20: #{tpu_custom_call.1} parent=1 // pred_region
      _
    $region21: #{tpu_custom_call.1} parent=1 // pred_fallthru
      _
    // Predicated region
    $region22: #{tpu_custom_call.1} parent=1 // pred_check
      _
    $region23: #{tpu_custom_call.1} parent=1 // pred_check_branch
      %36 = sbr.rel (0) target = $region25
    $region24: #{tpu_custom_call.1} parent=1 // pred_region
      _
    $region25: #{tpu_custom_call.1} parent=1 // pred_fallthru
      _
    // Predicated region
    $region26: #{tpu_custom_call.1} parent=1 // pred_check
      _
    $region27: #{tpu_custom_call.1} parent=1 // pred_check_branch
      %38 = sbr.rel (0) target = $region29
    $region28: #{tpu_custom_call.1} parent=1 // pred_region
      _
    $region29: #{tpu_custom_call.1} parent=1 // pred_fallthru
      _
    // Predicated region
    $region30: #{tpu_custom_call.1} parent=1 // pred_check
      _
    $region31: #{tpu_custom_call.1} parent=1 // pred_check_branch
      %40 = sbr.rel (0) target = $region33
    $region32: #{tpu_custom_call.1} parent=1 // pred_region
      _
    $region33: #{tpu_custom_call.1} parent=1 // pred_fallthru
      _
    %v41 = vld [vmem:[%s1] sm:$0xff]
    %v42 = vld [vmem:[%s1 + $0x8] sm:$0xff]
    %v43 = vld [vmem:[%s2] sm:$0x3]
    %v44 = vld [vmem:[%s3] sm:$0xff]
    %v45 = vld [vmem:[%s3 + $0x8] sm:$0xff]
    %v46 = vld [vmem:[%s3 + $0x10] sm:$0xff]
    %v47 = vld [vmem:[%s3 + $0x18] sm:$0xff]
    %v48 = vld [vmem:[%s3 + $0x20] sm:$0xff]
    %v49 = vld [vmem:[%s3 + $0x28] sm:$0xff]
    %v50 = vld [vmem:[%s3 + $0x30] sm:$0xff]
    %v51 = vld [vmem:[%s3 + $0x38] sm:$0xff]
    %v52 = vld [vmem:[%s4] sm:$0x1]
    %v54 = vperm.slane %v52, 0
    %vm56 = vcmask 523264
    %v58 = vsel %vm56, %v43, 0
    %60 = vmatpush.msra.mxu0 0.0
    %61 = vmatpush.msra.mxu0 0.0
    %62 = vmatpush.msra.mxu0 0.0
    %63 = vmatpush.msra.mxu0 0.0
    %64 = vmatpush.msra.mxu0 0.0
    %65 = vmatpush.msra.mxu0 0.0
    %66 = vmatpush.msra.mxu0 0.0
    %67 = vmatpush.msra.mxu0 0.0
    %68 = vmatpush.msra.mxu0 %v51
    %69 = vmatpush.msra.mxu0 %v50
    %70 = vmatpush.msra.mxu0 %v49
    %71 = vmatpush.msra.mxu0 %v48
    %72 = vmatpush.msra.mxu0 %v47
    %73 = vmatpush.msra.mxu0 %v46
    %74 = vmatpush.msra.mxu0 %v45
    %75 = vmatpush.msra.mxu0 %v44
    %76 = vmatmul.f32.gmra.mxu0 %v58
    %v77 = vpop.f32.mrf.mxu0
    %v78 = vadd.f32 %v54, %v77
    %79 = vdwg.mxu0
    %v80 = vmax.f32 %v78, 0.0
    %v81 = vld [vmem:[%s5] sm:$0xff]
    %v82 = vld [vmem:[%s5 + $0x8] sm:$0xff]
    %v83 = vld [vmem:[%s5 + $0x10] sm:$0xff]
    %v84 = vld [vmem:[%s5 + $0x18] sm:$0xff]
    %v85 = vld [vmem:[%s5 + $0x20] sm:$0xff]
    %v86 = vld [vmem:[%s5 + $0x28] sm:$0xff]
    %v87 = vld [vmem:[%s5 + $0x30] sm:$0xff]
    %v88 = vld [vmem:[%s5 + $0x38] sm:$0xff]
    %v89 = vld [vmem:[%s6] sm:$0x1]
    %v91 = vperm.slane %v89, 0
    %v94 = vsel %vm56, %v80, 0
    %96 = vmatpush.msra.mxu0 0.0
    %97 = vmatpush.msra.mxu0 0.0
    %98 = vmatpush.msra.mxu0 0.0
    %99 = vmatpush.msra.mxu0 0.0
    %100 = vmatpush.msra.mxu0 0.0
    %101 = vmatpush.msra.mxu0 0.0
    %102 = vmatpush.msra.mxu0 0.0
    %103 = vmatpush.msra.mxu0 0.0
    %104 = vmatpush.msra.mxu0 %v88
    %105 = vmatpush.msra.mxu0 %v87
    %106 = vmatpush.msra.mxu0 %v86
    %107 = vmatpush.msra.mxu0 %v85
    %108 = vmatpush.msra.mxu0 %v84
    %109 = vmatpush.msra.mxu0 %v83
    %110 = vmatpush.msra.mxu0 %v82
    %111 = vmatpush.msra.mxu0 %v81
    %112 = vmatmul.f32.gmra.mxu0 %v94
    %v113 = vpop.f32.mrf.mxu0
    %v114 = vadd.f32 %v91, %v113
    %115 = vdwg.mxu0
    %v116 = vld [vmem:[%s7] sm:$0x1]
    %v118 = vperm.slane %v116, 0
    %v120 = vmul.f32 %v114, %v118
    %v122 = vrot.slane %v120, 1
    %v123 = vperm.slane %v120, 0
    %v124 = vperm.slane %v122, 0
    %v127 = vmul.f32 %v41, %v123
    %v128 = vmul.f32 %v42, %v124
    %vm129 = vcmask 261120
    %v130 = vsel %vm129, %v127, 0.0
    %131 = vadd.xlane.f32.xlu0 %v130
    %v132 = vpop.xlane.xlu0 %131
    %v133 = vsel %vm129, %v128, 0.0
    %134 = vadd.xlane.f32.xlu0 %v133
    %v135 = vpop.xlane.xlu0 %134
    %v136 = vld [vmem:[#allocation4] sm:$0x1]
    %v138 = vperm.slane %v136, 0
    %139 = vset.pattern.permute.xlu0 0
    %140 = vperm.xlu0 %139, %v138
    %v141 = vpop.permute.xlu0 %140
    %v143 = vadd.f32 %v132, %v141
    %v144 = vadd.f32 %v135, %v141
    %v145 = vlaneseq
    %v146 = vand.u32 %v145, 127
    %s147 = smul.u32 0, 2
    %s148 = sld [smem:[#allocation3 + %s147]]
    %v149 = vstv %s148
    %s150 = sadd.s32 %s147, 1
    %s151 = sld [smem:[#allocation3 + %s150]]
    %v152 = vstv %s151
    %vm153 = vcmask 1040384
    %v154 = vsel %vm153, %v149, %v152
    %vm155 = vcmp.ge.s32.totalorder %v146, %v154
    %v158 = vperm.slane %v143, %v146
    %v159 = vperm.slane %v144, %v146
    %vm160 = vcmask 1041409
    %v161 = vsel %vm160, %v159, %v158
    %v163 = vsel %vm155, -inf, %v161
    %vm164 = vcmask 58368
    %v165 = vsel %vm164, %v163, -inf
    %166 = vmax.xlane.f32.xlu0 %v165
    %v167 = vpop.xlane.xlu0 %166
    %v168 = vsub.f32 %v163, %v167
    %v169 = vmul.f32 %v168, 1.442695
    %v170 = vpow.pop %v169
    %v171 = vsel %vm164, %v170, 0.0
    %172 = vadd.xlane.f32.xlu0 %v171
    %v173 = vpop.xlane.xlu0 %172
    %v174 = vrcp.pop %v173
    %v175 = vmul.f32 %v170, %v174
    %vm176 = vcmp.ne.f32.partialorder %v175, %v175
    %v177 = vsel %vm176, 0.0, %v175
    %v178 = vperm.slane %v177, 0
    %v179 = vlaneseq
    %v180 = vshrl.u32 %v179, 7
    %182 = vset.pattern.permute.xlu0 %v180
    %183 = vperm.xlu0 %182, %v178
    %v184 = vpop.permute.xlu0 %183
    %v185 = vperm.slane %v177, 1
    %v186 = vlaneseq
    %v187 = vshrl.u32 %v186, 7
    %189 = vset.pattern.permute.xlu0 %v187
    %190 = vperm.xlu0 %189, %v185
    %v191 = vpop.permute.xlu0 %190
    %v192 = vmul.f32 %v184, %v41
    %v193 = vmul.f32 %v191, %v42
    %v194 = vsel %vm129, %v192, 0.0
    %v195 = vrot.slane %v194, 4
    %v196 = vadd.f32 %v194, %v195
    %v197 = vrot.slane %v196, 2
    %v198 = vadd.f32 %v196, %v197
    %v199 = vrot.slane %v198, 1
    %v200 = vadd.f32 %v198, %v199
    %v201 = vsel %vm129, %v193, 0.0
    %v202 = vrot.slane %v201, 4
    %v203 = vadd.f32 %v201, %v202
    %v204 = vrot.slane %v203, 2
    %v205 = vadd.f32 %v203, %v204
    %v206 = vrot.slane %v205, 1
    %v207 = vadd.f32 %v205, %v206
    %v210 = vsel %vm160, %v207, %v200
    %vm212 = vcmask 254976
    %213 = vst.msk [vmem:[#allocation5] sm:$0x3] %vm212, %v210
    // Predicated region
    $region34: #{tpu_custom_call.1} parent=1 // pred_check
      _
    $region35: #{tpu_custom_call.1} parent=1 // pred_check_branch
      %215 = sbr.rel (0) target = $region37
    $region36: #{tpu_custom_call.1} parent=1 // pred_region
      %217 = vsyncadd [#allocation6], 0
      %s219 = sshll.u32 [#allocation5], 4
      %s220 = int_to_ptr.vmem [resolvable:$true] %s219
      %s221 = sshll.u32 %s9, 4
      %s222 = int_to_ptr.hbm [resolvable:$true] %s221
      %224 = dma.vmem_to_hbm [thread:$0]  %s220, 32, %s222, [#allocation6]
    $region37: #{tpu_custom_call.1} parent=1 // pred_fallthru
      _
    // Predicated region
    $region38: #{tpu_custom_call.1} parent=1 // pred_check
      _
    $region39: #{tpu_custom_call.1} parent=1 // pred_check_branch
      %226 = sbr.rel (0) target = $region41
    $region40: #{tpu_custom_call.1} parent=1 // pred_region
      %228 = dma.done [#allocation6], 32
    $region41: #{tpu_custom_call.1} parent=1 // pred_fallthru
      _
    %229 = vsyncpa [#allocation6], 1

</llo_original>
